<compile_context>
chip_gen: v7x
topology: tpu7x:2x2x1
jax: 0.10.0
libtpu: 0.0.40
codegen_flags: <defaults>
</compile_context>

<pallas_src>
import jax
import jax.numpy as jnp
from jax.experimental import pallas as pl
from jax.experimental.pallas import tpu as pltpu

_LANES = 128
_TARGET_BLOCK_BYTES = 2 * 1024 * 1024  # per-buffer VMEM target
_PAD_LANE_WIDTH = 1024                 # lane width for the (rare) pad fallback


def _relu_kernel(x_ref, o_ref):
    # relu(x + zeros_like(x)) == relu(x); the add is elided on purpose.
    o_ref[...] = jnp.maximum(x_ref[...], 0)


def relu_add_zeros(x: jax.Array) -> jax.Array:
    """Elementwise relu(x + zeros_like(x)) as a Pallas TPU kernel."""
    orig_shape = x.shape
    dtype = x.dtype
    n = x.size
    if n == 0:
        return x

    itemsize = jnp.dtype(dtype).itemsize
    # Native sublane packing: 8 rows for 32-bit, 16 for 16-bit, 32 for 8-bit.
    sublanes = max(8, 32 // max(int(itemsize), 1))

    # ---------------- choose a 2-D lane-dense view (zero-copy if possible) ----
    pad = 0
    if n % _LANES == 0:
        # Free reshape of the contiguous array; widest lane axis dividing n.
        lane_cols = _LANES
        for w in (2048, 1024, 512, 256):
            if n % w == 0:
                lane_cols = w
                break
        x2d = x.reshape(n // lane_cols, lane_cols)
    elif (
        x.ndim >= 2
        and orig_shape[-1] >= _LANES
        and pl.cdiv(orig_shape[-1], _LANES) * _LANES * itemsize * sublanes
        <= _TARGET_BLOCK_BYTES
    ):
        # Zero-copy: collapse leading dims, keep the (>=128-wide) last dim as
        # the lane axis.  Ragged leading dim is covered by a masked edge block.
        lane_cols = orig_shape[-1]
        x2d = x.reshape(n // lane_cols, lane_cols)
    else:
        # Fallback for tiny / pathological shapes: pad the flat view to a
        # multiple of the lane width (extra copy, but only taken when no free
        # lane-dense view exists).
        lane_cols = _PAD_LANE_WIDTH
        n_pad = pl.cdiv(n, lane_cols) * lane_cols
        pad = n_pad - n
        x2d = jnp.pad(x.reshape(-1), (0, pad)).reshape(n_pad // lane_cols, lane_cols)

    rows = x2d.shape[0]

    # Rows per block: ~2 MiB of VMEM per buffer (counting lane padding of the
    # VMEM layout), multiple of the dtype's sublane packing.
    vmem_row_bytes = pl.cdiv(lane_cols, _LANES) * _LANES * itemsize
    block_rows = (_TARGET_BLOCK_BYTES // vmem_row_bytes) // sublanes * sublanes
    block_rows = max(block_rows, sublanes)
    if block_rows >= rows:
        # Single full-array block: no (8,128) divisibility constraint applies.
        block_rows = rows

    grid = (pl.cdiv(rows, block_rows),)

    out2d = pl.pallas_call(
        _relu_kernel,
        out_shape=jax.ShapeDtypeStruct((rows, lane_cols), dtype),
        grid_spec=pltpu.PrefetchScalarGridSpec(
            num_scalar_prefetch=0,
            grid=grid,
            in_specs=[pl.BlockSpec((block_rows, lane_cols), lambda i: (i, 0))],
            out_specs=pl.BlockSpec((block_rows, lane_cols), lambda i: (i, 0)),
        ),
        compiler_params=pltpu.CompilerParams(
            # "parallel" lets v7x shard the single grid axis across its 2 TCs.
            dimension_semantics=("parallel",),
        ),
    )(x2d)

    out_flat = out2d.reshape(-1)
    if pad:
        out_flat = out_flat[:n]
    return out_flat.reshape(orig_shape)


if __name__ == "__main__":
    key = jax.random.PRNGKey(0)

    # Primary test: NCHW input, small shape consistent with the module.
    # n = 2048 -> zero-copy lane-dense path, single full block.
    x = jax.random.normal(key, (2, 4, 16, 16), dtype=jnp.float32)
    out = jax.block_until_ready(relu_add_zeros(x))
    ref = jnp.maximum(x + jnp.zeros_like(x), 0.0)
    assert out.shape == x.shape and out.dtype == x.dtype
    assert bool(jnp.allclose(out, ref)), "mismatch (lane-dense small path)"

    # Non-128-multiple size, wide last dim -> zero-copy collapsed-leading path.
    k1 = jax.random.PRNGKey(1)
    x_b = jax.random.normal(k1, (2, 4, 20, 130), dtype=jnp.float32)
    out_b = jax.block_until_ready(relu_add_zeros(x_b))
    assert bool(jnp.allclose(out_b, jnp.maximum(x_b, 0.0))), "mismatch (collapsed path)"

    # Tiny awkward shape -> pad fallback path.
    k2 = jax.random.PRNGKey(2)
    x_c = jax.random.normal(k2, (3, 5, 7), dtype=jnp.float32)
    out_c = jax.block_until_ready(relu_add_zeros(x_c))
    assert bool(jnp.allclose(out_c, jnp.maximum(x_c, 0.0))), "mismatch (pad path)"

    # Multi-block grid with a ragged (masked) edge block, bf16.
    k3 = jax.random.PRNGKey(3)
    x_d = jax.random.normal(k3, (8, 100, 2048), dtype=jnp.bfloat16)
    out_d = jax.block_until_ready(relu_add_zeros(x_d))
    assert out_d.dtype == x_d.dtype
    assert bool(jnp.allclose(out_d, jnp.maximum(x_d, 0))), "mismatch (tiled path)"

    print("KERNEL_OK")
</pallas_src>

<mosaic_0001>
module attributes {stable_mosaic.version = 11 : i64} {
  func.func @_relu_kernel(%arg0: i32, %arg1: memref<1x2048xf32, #tpu.memory_space<vmem>>, %arg2: memref<1x2048xf32, #tpu.memory_space<vmem>>) attributes {dimension_semantics = [#tpu.dimension_semantics<parallel>], iteration_bounds = array<i64: 1>, scalar_prefetch = 0 : i64, scratch_operands = 0 : i64, tpu.core_type = #tpu.core_type<tc>, window_params = [{transform_indices = @transform_0, window_bounds = array<i64: 1, 2048>}, {transform_indices = @transform_1, window_bounds = array<i64: 1, 2048>}]} {
    %c0 = arith.constant 0 : index
    %c0_0 = arith.constant 0 : index
    %0 = vector.load %arg1[%c0, %c0_0] : memref<1x2048xf32, #tpu.memory_space<vmem>>, vector<1x2048xf32>
    %cst = arith.constant 0.000000e+00 : f32
    %1 = vector.broadcast %cst : f32 to vector<1x2048xf32>
    %2 = arith.maximumf %0, %1 : vector<1x2048xf32>
    %c0_1 = arith.constant 0 : index
    %c0_2 = arith.constant 0 : index
    %3 = vector.load %arg2[%c0_1, %c0_2] : memref<1x2048xf32, #tpu.memory_space<vmem>>, vector<1x2048xf32>
    tpu.vector_store %arg2[%c0_1, %c0_2], %2 {strides = array<i32>} : memref<1x2048xf32, #tpu.memory_space<vmem>>, vector<1x2048xf32>,
    return
  }
  func.func @transform_0(%arg0: i32) -> (i32, i32) {
    %c0_i32 = arith.constant 0 : i32
    %c0_i32_0 = arith.constant 0 : i32
    return %arg0, %c0_i32 : i32, i32
  }
  func.func @transform_1(%arg0: i32) -> (i32, i32) {
    %c0_i32 = arith.constant 0 : i32
    %c0_i32_0 = arith.constant 0 : i32
    return %arg0, %c0_i32 : i32, i32
  }
}

</mosaic_0001>

<llo_original>
// kernel: tpu_custom_call.1
$region0: #{tpu_custom_call.1}
  #allocation0 [shape = 'u32[]', space=smem, size = 0x4, offset = 0x4, fixed_abs, tag = 'smem constant byte address 0x4 - core index']
  #allocation1 [shape = 'u32[144,128]{1,0:T(1,128)}', space=vmem, size = 0x12000, scoped, tag = 'internal scratch']
  %s0 = inlined_call_operand.hbm [shape: f32[1,2048], index: 0, kind: input, shape index: {}]
  %s1 = inlined_call_operand.hbm [shape: f32[1,2048], index: 1, kind: output, shape index: {}]
  %s2 = sld [smem:[#allocation0]]
  $region18: #{tpu_custom_call.1} parent=0
    _
  %s4 = ssub.s32 1, %s2
  %s5 = scalar_select 0, %s4, %s2
  $region1: #{tpu_custom_call.1} parent=0
    #allocation2 [shape = 'u8[8192]{0}', space=vmem, size = 0x2000, scoped, tag = 'input window, operand 0, single buffered']
    #allocation3 [shape = 's32[1]{0}', space=sflag, size = 0x4, scoped, tag = 'scoped memory for tpu_custom_call.1']
    #allocation4 [shape = 's32[1]{0}', space=sflag, size = 0x4, scoped, tag = 'scoped memory for tpu_custom_call.1']
    #allocation5 [shape = 'u8[8192]{0}', space=vmem, size = 0x2000, scoped, tag = 'output window, operand 0, single buffered']
    %6 = vsyncpa [#allocation3], 0
    %7 = vsyncpa [#allocation4], 0
    // Predicated region
    $region2: #{tpu_custom_call.1} parent=1 // pred_check
      _
    $region3: #{tpu_custom_call.1} parent=1 // pred_check_branch
      %9 = sbr.rel (0) target = $region5
    $region4: #{tpu_custom_call.1} parent=1 // pred_region
      %s11 = ssub.s32 256, 256
      %12 = vsyncadd [#allocation3], %s11
      %s14 = sshll.u32 [#allocation2], 4
      %s15 = int_to_ptr.vmem [resolvable:$true] %s14
      %17 = dma.hbm_to_vmem [thread:$0]  %s0, 256, %s15, [#allocation3]
    $region5: #{tpu_custom_call.1} parent=1 // pred_fallthru
      _
    // Predicated region
    $region6: #{tpu_custom_call.1} parent=1 // pred_check
      _
    $region7: #{tpu_custom_call.1} parent=1 // pred_check_branch
      %19 = sbr.rel (0) target = $region9
    $region8: #{tpu_custom_call.1} parent=1 // pred_region
      %20 = dma.done [#allocation3], 256
    $region9: #{tpu_custom_call.1} parent=1 // pred_fallthru
      _
    %v21 = vld [vmem:[#allocation2] sm:$0xff]
    %v22 = vld [vmem:[#allocation2 + $0x8] sm:$0xff]
    %v23 = vmax.f32 %v21, 0.0
    %v24 = vmax.f32 %v22, 0.0
    %25 = vst [vmem:[#allocation5] sm:$0xff] %v23
    %26 = vst [vmem:[#allocation5 + $0x8] sm:$0xff] %v24
    // Predicated region
    $region10: #{tpu_custom_call.1} parent=1 // pred_check
      _
    $region11: #{tpu_custom_call.1} parent=1 // pred_check_branch
      %28 = sbr.rel (0) target = $region13
    $region12: #{tpu_custom_call.1} parent=1 // pred_region
      %s30 = ssub.s32 256, 256
      %31 = vsyncadd [#allocation4], %s30
      %s33 = sshll.u32 [#allocation5], 4
      %s34 = int_to_ptr.vmem [resolvable:$true] %s33
      %36 = dma.vmem_to_hbm [thread:$0]  %s34, 256, %s1, [#allocation4]
    $region13: #{tpu_custom_call.1} parent=1 // pred_fallthru
      _
    // Predicated region
    $region14: #{tpu_custom_call.1} parent=1 // pred_check
      _
    $region15: #{tpu_custom_call.1} parent=1 // pred_check_branch
      %38 = sbr.rel (0) target = $region17
    $region16: #{tpu_custom_call.1} parent=1 // pred_region
      %39 = dma.done [#allocation4], 256
    $region17: #{tpu_custom_call.1} parent=1 // pred_fallthru
      _
    %40 = vsyncpa [#allocation3], 1
    %41 = vsyncpa [#allocation4], 1

</llo_original>
